<compile_context>
chip_gen: v5e
topology: v5e:2x2
jax: 0.10.0
libtpu: 0.0.40
codegen_flags: <defaults>
</compile_context>

<pallas_src>
import functools

import jax
import jax.numpy as jnp
from jax import lax
from jax.experimental import pallas as pl
from jax.experimental.pallas import tpu as pltpu


def _switch_gate_kernel(logits_ref, *out_refs, num_tokens, block_tokens,
                        with_balance, needs_mask):
    if with_balance:
        sample_ref, mult_ref, counts_ref, psum_ref = out_refs
    else:
        sample_ref, mult_ref = out_refs

    x = logits_ref[...].astype(jnp.float32)                # (bt, E) tokens on sublanes
    xt = x.T                                               # (E, bt) tokens on lanes (XLU)
    E = xt.shape[0]

    # numerically-stable softmax statistics along experts (now the sublane axis)
    m = jnp.max(xt, axis=0, keepdims=True)                 # (1, bt)
    e = jnp.exp(xt - m)                                    # (E, bt)
    denom = jnp.sum(e, axis=0, keepdims=True)              # (1, bt)
    mult = 1.0 / denom                                     # (1, bt) == max softmax prob

    # argmax (first occurrence) from the logits max — no need to materialize p
    row = lax.broadcasted_iota(jnp.int32, xt.shape, 0)     # (E, bt)
    idx = jnp.min(jnp.where(xt == m, row, E), axis=0, keepdims=True)  # (1, bt)

    # lane-dense (1, bt) stores
    sample_ref[...] = idx.astype(sample_ref.dtype)
    mult_ref[...] = mult.astype(mult_ref.dtype)

    if with_balance:
        p = e * mult                                       # (E, bt) softmax probs
        onehot = (row == idx).astype(jnp.float32)          # (E, bt)
        if needs_mask:
            i = pl.program_id(0)
            tok = i * block_tokens + lax.broadcasted_iota(
                jnp.int32, (1, block_tokens), 1)           # (1, bt) global token id
            valid = (tok < num_tokens).astype(jnp.float32)
        else:
            valid = jnp.ones((1, block_tokens), jnp.float32)
        # sum over tokens (lanes) as a tiny matmul -> (1, E) partials, MXU slot is free
        dn = (((1,), (1,)), ((), ()))
        counts_ref[...] = lax.dot_general(valid, onehot, dn,
                                          preferred_element_type=jnp.float32)
        psum_ref[...] = lax.dot_general(valid, p, dn,
                                        preferred_element_type=jnp.float32)


def _round_up(x, m):
    return (x + m - 1) // m * m


def switch_gate(logits, num_experts, compute_balance_loss=False, block_tokens=2048):
    """Pallas implementation of SwitchGate.forward (eval mode)."""
    N, E = logits.shape
    assert E == num_experts

    # pick the token tile: at most block_tokens, at most (padded) N, multiple of 8
    bt = min(_round_up(block_tokens, 8), _round_up(N, 8))
    n_pad = _round_up(N, bt)
    if n_pad != N:
        logits = jnp.pad(logits, ((0, n_pad - N), (0, 0)))
    num_blocks = n_pad // bt

    kernel = functools.partial(
        _switch_gate_kernel,
        num_tokens=N,
        block_tokens=bt,
        with_balance=compute_balance_loss,
        needs_mask=(n_pad != N),
    )

    out_shape = [
        jax.ShapeDtypeStruct((num_blocks, bt), jnp.int32),    # sample  (lane-dense)
        jax.ShapeDtypeStruct((num_blocks, bt), jnp.float32),  # multiplier (lane-dense)
    ]
    out_specs = [
        pl.BlockSpec((1, bt), lambda i: (i, 0)),
        pl.BlockSpec((1, bt), lambda i: (i, 0)),
    ]
    if compute_balance_loss:
        out_shape += [
            jax.ShapeDtypeStruct((num_blocks, E), jnp.float32),  # per-block counts
            jax.ShapeDtypeStruct((num_blocks, E), jnp.float32),  # per-block prob sums
        ]
        out_specs += [
            pl.BlockSpec((1, E), lambda i: (i, 0)),
            pl.BlockSpec((1, E), lambda i: (i, 0)),
        ]

    outs = pl.pallas_call(
        kernel,
        out_shape=tuple(out_shape),
        grid_spec=pltpu.PrefetchScalarGridSpec(
            num_scalar_prefetch=0,
            grid=(num_blocks,),
            in_specs=[pl.BlockSpec((bt, E), lambda i: (i, 0))],
            out_specs=out_specs,
        ),
        compiler_params=pltpu.CompilerParams(
            dimension_semantics=("parallel",),
        ),
    )(logits)

    if compute_balance_loss:
        sample_blk, mult_blk, counts_blk, psum_blk = outs
    else:
        sample_blk, mult_blk = outs

    sample = sample_blk.reshape(-1)[:N]                      # (N,)
    multiplier = mult_blk.reshape(-1)[:N][:, None]           # (N, 1), matches torch gather

    balance_loss = jnp.float32(0.0)
    if compute_balance_loss:
        counts = jnp.sum(counts_blk, axis=0)                 # (E,)
        psum = jnp.sum(psum_blk, axis=0)                     # (E,)
        f = counts / (jnp.sum(counts) + 1e-6)
        pmean = psum / N
        balance_loss = num_experts * jnp.sum(pmean * f)

    return sample, multiplier, balance_loss


def _reference(logits, num_experts):
    p = jax.nn.softmax(logits.astype(jnp.float32), axis=-1)
    s = jnp.argmax(p, axis=-1)
    m = jnp.take_along_axis(p, s[:, None], axis=-1)
    counts = jnp.sum(jax.nn.one_hot(s, num_experts, dtype=jnp.float32), axis=0)
    f = counts / (jnp.sum(counts) + 1e-6)
    bl = num_experts * jnp.sum(jnp.mean(p, axis=0) * f)
    return s, m, bl


if __name__ == "__main__":
    num_experts = 8
    key = jax.random.PRNGKey(0)
    k1, k2 = jax.random.split(key)

    # case 1: batch=2, seq=8 -> 16 tokens, 8 experts (no padding, balance loss on)
    logits1 = jax.random.normal(k1, (16, num_experts), dtype=jnp.float32)
    s1, m1, b1 = switch_gate(logits1, num_experts, compute_balance_loss=True)
    jax.block_until_ready((s1, m1, b1))
    rs1, rm1, rb1 = _reference(logits1, num_experts)
    assert jnp.array_equal(s1, rs1.astype(s1.dtype))
    assert jnp.allclose(m1, rm1, atol=1e-5)
    assert jnp.allclose(b1, rb1, atol=1e-5)

    # case 2: 20 tokens with a 16-token block -> exercises padding + masking
    logits2 = jax.random.normal(k2, (20, num_experts), dtype=jnp.float32)
    s2, m2, b2 = switch_gate(logits2, num_experts, compute_balance_loss=True,
                             block_tokens=16)
    jax.block_until_ready((s2, m2, b2))
    rs2, rm2, rb2 = _reference(logits2, num_experts)
    assert jnp.array_equal(s2, rs2.astype(s2.dtype))
    assert jnp.allclose(m2, rm2, atol=1e-5)
    assert jnp.allclose(b2, rb2, atol=1e-5)

    # case 3: inference path specialization (no balance loss outputs at all)
    s3, m3, b3 = switch_gate(logits2, num_experts, compute_balance_loss=False,
                             block_tokens=16)
    jax.block_until_ready((s3, m3))
    assert jnp.array_equal(s3, rs2.astype(s3.dtype))
    assert jnp.allclose(m3, rm2, atol=1e-5)
    assert float(b3) == 0.0

    print("KERNEL_OK")
</pallas_src>

<mosaic_0001>
module attributes {stable_mosaic.version = 11 : i64} {
  func.func @_switch_gate_kernel(%arg0: i32, %arg1: memref<16x8xf32, #tpu.memory_space<vmem>>, %arg2: memref<1x16xi32, #tpu.memory_space<vmem>>, %arg3: memref<1x16xf32, #tpu.memory_space<vmem>>, %arg4: memref<1x8xf32, #tpu.memory_space<vmem>>, %arg5: memref<1x8xf32, #tpu.memory_space<vmem>>) attributes {dimension_semantics = [#tpu.dimension_semantics<parallel>], iteration_bounds = array<i64: 1>, scalar_prefetch = 0 : i64, scratch_operands = 0 : i64, tpu.core_type = #tpu.core_type<tc>, window_params = [{transform_indices = @transform_0, window_bounds = array<i64: 16, 8>}, {transform_indices = @transform_1, window_bounds = array<i64: 1, 16>}, {transform_indices = @transform_2, window_bounds = array<i64: 1, 16>}, {transform_indices = @transform_3, window_bounds = array<i64: 1, 8>}, {transform_indices = @transform_4, window_bounds = array<i64: 1, 8>}]} {
    %c0 = arith.constant 0 : index
    %c0_0 = arith.constant 0 : index
    %0 = vector.load %arg1[%c0, %c0_0] : memref<16x8xf32, #tpu.memory_space<vmem>>, vector<16x8xf32>
    %1 = tpu.transpose %0, [1, 0] : vector<16x8xf32> -> vector<8x16xf32>
    %cst = arith.constant dense<0xFF800000> : vector<16xf32>
    %2 = vector.multi_reduction <maximumf>, %1, %cst [0] : vector<8x16xf32> to vector<16xf32>
    %3 = vector.shape_cast %2 : vector<16xf32> to vector<1x16xf32>
    %4 = vector.broadcast %3 : vector<1x16xf32> to vector<8x16xf32>
    %5 = arith.subf %1, %4 : vector<8x16xf32>
    %6 = math.exp %5 : vector<8x16xf32>
    %cst_1 = arith.constant dense<0.000000e+00> : vector<16xf32>
    %7 = vector.multi_reduction <add>, %6, %cst_1 [0] : vector<8x16xf32> to vector<16xf32>
    %8 = vector.shape_cast %7 : vector<16xf32> to vector<1x16xf32>
    %cst_2 = arith.constant 1.000000e+00 : f32
    %9 = vector.broadcast %cst_2 : f32 to vector<1x16xf32>
    %10 = arith.divf %9, %8 : vector<1x16xf32>
    %11 = tpu.iota {dimensions = array<i32: 0>} : vector<8x16xi32>
    %12 = vector.broadcast %3 : vector<1x16xf32> to vector<8x16xf32>
    %13 = arith.cmpf oeq, %1, %12 : vector<8x16xf32>
    %c8_i32 = arith.constant 8 : i32
    %14 = vector.broadcast %c8_i32 : i32 to vector<8x16xi32>
    %15 = arith.select %13, %11, %14 : vector<8x16xi1>, vector<8x16xi32>
    %cst_3 = arith.constant dense<2147483647> : vector<16xi32>
    %16 = vector.multi_reduction <minsi>, %15, %cst_3 [0] : vector<8x16xi32> to vector<16xi32>
    %17 = vector.shape_cast %16 : vector<16xi32> to vector<1x16xi32>
    %c0_4 = arith.constant 0 : index
    %c0_5 = arith.constant 0 : index
    %18 = vector.load %arg2[%c0_4, %c0_5] : memref<1x16xi32, #tpu.memory_space<vmem>>, vector<1x16xi32>
    tpu.vector_store %arg2[%c0_4, %c0_5], %17 {strides = array<i32>} : memref<1x16xi32, #tpu.memory_space<vmem>>, vector<1x16xi32>,
    %c0_6 = arith.constant 0 : index
    %c0_7 = arith.constant 0 : index
    %19 = vector.load %arg3[%c0_6, %c0_7] : memref<1x16xf32, #tpu.memory_space<vmem>>, vector<1x16xf32>
    tpu.vector_store %arg3[%c0_6, %c0_7], %10 {strides = array<i32>} : memref<1x16xf32, #tpu.memory_space<vmem>>, vector<1x16xf32>,
    %20 = vector.broadcast %10 : vector<1x16xf32> to vector<8x16xf32>
    %21 = arith.mulf %6, %20 : vector<8x16xf32>
    %22 = vector.broadcast %17 : vector<1x16xi32> to vector<8x16xi32>
    %23 = arith.cmpi eq, %11, %22 : vector<8x16xi32>
    %24 = arith.extui %23 : vector<8x16xi1> to vector<8x16xi32>
    %25 = arith.sitofp %24 : vector<8x16xi32> to vector<8x16xf32>
    %cst_8 = arith.constant 1.000000e+00 : f32
    %26 = vector.broadcast %cst_8 : f32 to vector<1x16xf32>
    %cst_9 = arith.constant dense<0.000000e+00> : vector<1x8xf32>
    %27 = tpu.matmul %26, %25, %cst_9 {dimension_numbers = #tpu.dot_dimension_numbers<[1], [1], [0], [0], [0, 0, 1, 0], [], []>} : vector<1x16xf32>, vector<8x16xf32>, vector<1x8xf32> -> vector<1x8xf32>
    %c0_10 = arith.constant 0 : index
    %c0_11 = arith.constant 0 : index
    %28 = vector.load %arg4[%c0_10, %c0_11] : memref<1x8xf32, #tpu.memory_space<vmem>>, vector<1x8xf32>
    tpu.vector_store %arg4[%c0_10, %c0_11], %27 {strides = array<i32>} : memref<1x8xf32, #tpu.memory_space<vmem>>, vector<1x8xf32>,
    %cst_12 = arith.constant dense<0.000000e+00> : vector<1x8xf32>
    %29 = tpu.matmul %26, %21, %cst_12 {dimension_numbers = #tpu.dot_dimension_numbers<[1], [1], [0], [0], [0, 0, 1, 0], [], []>} : vector<1x16xf32>, vector<8x16xf32>, vector<1x8xf32> -> vector<1x8xf32>
    %c0_13 = arith.constant 0 : index
    %c0_14 = arith.constant 0 : index
    %30 = vector.load %arg5[%c0_13, %c0_14] : memref<1x8xf32, #tpu.memory_space<vmem>>, vector<1x8xf32>
    tpu.vector_store %arg5[%c0_13, %c0_14], %29 {strides = array<i32>} : memref<1x8xf32, #tpu.memory_space<vmem>>, vector<1x8xf32>,
    return
  }
  func.func @transform_0(%arg0: i32) -> (i32, i32) {
    %c0_i32 = arith.constant 0 : i32
    %c0_i32_0 = arith.constant 0 : i32
    return %arg0, %c0_i32 : i32, i32
  }
  func.func @transform_1(%arg0: i32) -> (i32, i32) {
    %c0_i32 = arith.constant 0 : i32
    %c0_i32_0 = arith.constant 0 : i32
    return %arg0, %c0_i32 : i32, i32
  }
  func.func @transform_2(%arg0: i32) -> (i32, i32) {
    %c0_i32 = arith.constant 0 : i32
    %c0_i32_0 = arith.constant 0 : i32
    return %arg0, %c0_i32 : i32, i32
  }
  func.func @transform_3(%arg0: i32) -> (i32, i32) {
    %c0_i32 = arith.constant 0 : i32
    %c0_i32_0 = arith.constant 0 : i32
    return %arg0, %c0_i32 : i32, i32
  }
  func.func @transform_4(%arg0: i32) -> (i32, i32) {
    %c0_i32 = arith.constant 0 : i32
    %c0_i32_0 = arith.constant 0 : i32
    return %arg0, %c0_i32 : i32, i32
  }
}

</mosaic_0001>

<llo_original>
// kernel: tpu_custom_call.1
$region0: #{tpu_custom_call.1}
  #allocation0 [shape = 'u32[]', space=smem, size = 0x4, offset = 0x4, fixed_abs, tag = 'smem constant byte address 0x4 - core index']
  #allocation1 [shape = 'u32[72,128]{1,0:T(1,128)}', space=vmem, size = 0x9000, scoped, tag = 'internal scratch']
  %s0 = inlined_call_operand.vmem [shape: f32[16,8], index: 0, kind: input, shape index: {}]
  %s1 = inlined_call_operand.hbm [shape: s32[1,16], index: 1, kind: output, shape index: {0}]
  %s2 = inlined_call_operand.hbm [shape: f32[1,16], index: 2, kind: output, shape index: {1}]
  %s3 = inlined_call_operand.hbm [shape: f32[1,8], index: 3, kind: output, shape index: {2}]
  %s4 = inlined_call_operand.hbm [shape: f32[1,8], index: 4, kind: output, shape index: {3}]
  %5 = xla_tuple %s1, %s2, %s3, %s4
  %s6 = sld [smem:[#allocation0]]
  $region38: #{tpu_custom_call.1} parent=0
    _
  %s8 = ssub.s32 1, %s6
  %s9 = scalar_select 0, %s8, %s6
  $region1: #{tpu_custom_call.1} parent=0
    #allocation2 [shape = 'u8[512]{0}', space=vmem, size = 0x400, scoped, tag = 'output window, operand 0, single buffered']
    #allocation3 [shape = 's32[1]{0}', space=sflag, size = 0x4, scoped, tag = 'scoped memory for tpu_custom_call.1']
    #allocation4 [shape = 'u8[512]{0}', space=vmem, size = 0x400, scoped, tag = 'output window, operand 1, single buffered']
    #allocation5 [shape = 's32[1]{0}', space=sflag, size = 0x4, scoped, tag = 'scoped memory for tpu_custom_call.1']
    #allocation6 [shape = 'u8[512]{0}', space=vmem, size = 0x400, scoped, tag = 'output window, operand 2, single buffered']
    #allocation7 [shape = 'u8[512]{0}', space=vmem, size = 0x400, scoped, tag = 'output window, operand 3, single buffered']
    #allocation8 [shape = 's32[1]{0}', space=sflag, size = 0x4, scoped, tag = 'scoped memory for tpu_custom_call.1']
    %10 = vsyncpa [#allocation3], 0
    %11 = vsyncpa [#allocation5], 0
    %12 = vsyncpa [#allocation8], 0
    // Predicated region
    $region2: #{tpu_custom_call.1} parent=1 // pred_check
      _
    $region3: #{tpu_custom_call.1} parent=1 // pred_check_branch
      %14 = sbr.rel (0) target = $region5
    $region4: #{tpu_custom_call.1} parent=1 // pred_region
      _
    $region5: #{tpu_custom_call.1} parent=1 // pred_fallthru
      _
    %v15 = vld [vmem:[%s0] sm:$0xff]
    %v16 = vld [vmem:[%s0 + $0x8] sm:$0xff]
    %17 = vxpose.xlu0.b32.start [1/16] %v15, 128
    %18 = vxpose.xlu0.b32.cont [2/16] %v16, 128
    %19 = vxpose.xlu0.b32.cont [3/16] 0.0, 128
    %20 = vxpose.xlu0.b32.cont [4/16] 0.0, 128
    %21 = vxpose.xlu0.b32.cont [5/16] 0.0, 128
    %22 = vxpose.xlu0.b32.cont [6/16] 0.0, 128
    %23 = vxpose.xlu0.b32.cont [7/16] 0.0, 128
    %24 = vxpose.xlu0.b32.cont [8/16] 0.0, 128
    %25 = vxpose.xlu0.b32.cont [9/16] 0.0, 128
    %26 = vxpose.xlu0.b32.cont [10/16] 0.0, 128
    %27 = vxpose.xlu0.b32.cont [11/16] 0.0, 128
    %28 = vxpose.xlu0.b32.cont [12/16] 0.0, 128
    %29 = vxpose.xlu0.b32.cont [13/16] 0.0, 128
    %30 = vxpose.xlu0.b32.cont [14/16] 0.0, 128
    %31 = vxpose.xlu0.b32.cont [15/16] 0.0, 128
    %32 = vxpose.xlu0.b32.end [16/16] 0.0, 128
    %v33 = vpop.trf.xlu0
    %v34 = vpop.trf.xlu0
    %v35 = vpop.trf.xlu0
    %v36 = vpop.trf.xlu0
    %v37 = vpop.trf.xlu0
    %v38 = vpop.trf.xlu0
    %v39 = vpop.trf.xlu0
    %v40 = vpop.trf.xlu0
    %v41 = vpop.trf.xlu0
    %v42 = vpop.trf.xlu0
    %v43 = vpop.trf.xlu0
    %v44 = vpop.trf.xlu0
    %v45 = vpop.trf.xlu0
    %v46 = vpop.trf.xlu0
    %v47 = vpop.trf.xlu0
    %v48 = vpop.trf.xlu0
    %vm49 = vcmask 130048
    %v50 = vsel %vm49, %v33, -inf
    %v51 = vrot.slane %v50, 4
    %v52 = vmax.f32 %v50, %v51
    %v53 = vrot.slane %v52, 2
    %v54 = vmax.f32 %v52, %v53
    %v55 = vrot.slane %v54, 1
    %v56 = vmax.f32 %v54, %v55
    %v57 = vsub.f32 %v33, %v56
    %v58 = vmul.f32 %v57, 1.442695
    %v59 = vpow.pop %v58
    %v60 = vsel %vm49, %v59, 0.0
    %v61 = vrot.slane %v60, 4
    %v62 = vadd.f32 %v60, %v61
    %v63 = vrot.slane %v62, 2
    %v64 = vadd.f32 %v62, %v63
    %v65 = vrot.slane %v64, 1
    %v66 = vadd.f32 %v64, %v65
    %v67 = vrcp.pop %v66
    %v68 = vmul.f32 %v66, %v67
    %v69 = vsub.f32 1.0, %v68
    %v70 = vmul.f32 %v67, %v69
    %v71 = vadd.f32 %v67, %v70
    %vm72 = vweird.f32 %v66
    %vm73 = vweird.f32 %v67
    %vm74 = vmor %vm72, %vm73
    %v75 = vsel %vm74, %v67, %v71
    %v76 = vand.u32 2147483647, %v66
    %vm77 = vcmp.eq.f32.partialorder %v76, 8.507059e+37
    %v78 = vand.u32 %v66, 2147483648
    %v79 = vor.u32 1.1754944e-38, %v78
    %v80 = vsel %vm77, %v79, %v75
    %v81 = vmul.f32 1.0, %v80
    %v82 = vlaneseq
    %v83 = vshrl.u32 %v82, 7
    %vm84 = vcmp.eq.f32.partialorder %v33, %v56
    %v85 = vsel %vm84, %v83, 8
    %v86 = vsel %vm49, %v85, 2147483647
    %v87 = vrot.slane %v86, 4
    %vm88 = vcmp.lt.s32.totalorder %v86, %v87
    %v89 = vsel %vm88, %v86, %v87
    %v90 = vrot.slane %v89, 2
    %vm91 = vcmp.lt.s32.totalorder %v89, %v90
    %v92 = vsel %vm91, %v89, %v90
    %v93 = vrot.slane %v92, 1
    %vm94 = vcmp.lt.s32.totalorder %v92, %v93
    %v95 = vsel %vm94, %v92, %v93
    %vm96 = vcmask 122880
    %97 = vst.msk [vmem:[#allocation2] sm:$0x1] %vm96, %v95
    %98 = vst.msk [vmem:[#allocation4] sm:$0x1] %vm96, %v81
    %v99 = vmul.f32 %v59, %v81
    %vm100 = vcmp.eq.s32.totalorder %v83, %v95
    %v101 = vsel %vm100, 1, 0
    %v102 = vcvt.s32.f32 %v101
    %v104 = vsel %vm49, 1.0, 0
    %v107 = vsel %vm49, %v102, 0
    %109 = vmatpush.xpose.msra.mxu0 0.0
    %110 = vmatpush.xpose.msra.mxu0 0.0
    %111 = vmatpush.xpose.msra.mxu0 0.0
    %112 = vmatpush.xpose.msra.mxu0 0.0
    %113 = vmatpush.xpose.msra.mxu0 0.0
    %114 = vmatpush.xpose.msra.mxu0 0.0
    %115 = vmatpush.xpose.msra.mxu0 0.0
    %116 = vmatpush.xpose.msra.mxu0 0.0
    %117 = vmatpush.xpose.msra.mxu0 0.0
    %118 = vmatpush.xpose.msra.mxu0 0.0
    %119 = vmatpush.xpose.msra.mxu0 0.0
    %120 = vmatpush.xpose.msra.mxu0 0.0
    %121 = vmatpush.xpose.msra.mxu0 0.0
    %122 = vmatpush.xpose.msra.mxu0 0.0
    %123 = vmatpush.xpose.msra.mxu0 0.0
    %124 = vmatpush.xpose.msra.mxu0 %v107
    %125 = vmatmul.f32.gmra.mxu0 %v104
    %v126 = vpop.f32.mrf.mxu0
    %v127 = vadd.f32 0.0, %v126
    %128 = vdwg.mxu0
    %vm129 = vcmask 57344
    %130 = vst.msk [vmem:[#allocation6] sm:$0x1] %vm129, %v127
    %v132 = vsel %vm49, %v99, 0
    %134 = vmatpush.xpose.msra.mxu0 0.0
    %135 = vmatpush.xpose.msra.mxu0 0.0
    %136 = vmatpush.xpose.msra.mxu0 0.0
    %137 = vmatpush.xpose.msra.mxu0 0.0
    %138 = vmatpush.xpose.msra.mxu0 0.0
    %139 = vmatpush.xpose.msra.mxu0 0.0
    %140 = vmatpush.xpose.msra.mxu0 0.0
    %141 = vmatpush.xpose.msra.mxu0 0.0
    %142 = vmatpush.xpose.msra.mxu0 0.0
    %143 = vmatpush.xpose.msra.mxu0 0.0
    %144 = vmatpush.xpose.msra.mxu0 0.0
    %145 = vmatpush.xpose.msra.mxu0 0.0
    %146 = vmatpush.xpose.msra.mxu0 0.0
    %147 = vmatpush.xpose.msra.mxu0 0.0
    %148 = vmatpush.xpose.msra.mxu0 0.0
    %149 = vmatpush.xpose.msra.mxu0 %v132
    %150 = vmatmul.f32.gmra.mxu0 %v104
    %v151 = vpop.f32.mrf.mxu0
    %v152 = vadd.f32 0.0, %v151
    %153 = vdwg.mxu0
    %154 = vst.msk [vmem:[#allocation7] sm:$0x1] %vm129, %v152
    // Predicated region
    $region6: #{tpu_custom_call.1} parent=1 // pred_check
      _
    $region7: #{tpu_custom_call.1} parent=1 // pred_check_branch
      %156 = sbr.rel (0) target = $region9
    $region8: #{tpu_custom_call.1} parent=1 // pred_region
      %158 = vsyncadd [#allocation3], 0
      %s160 = sshll.u32 [#allocation2], 4
      %s161 = int_to_ptr.vmem [resolvable:$true] %s160
      %s162 = sshll.u32 %s1, 4
      %s163 = int_to_ptr.hbm [resolvable:$true] %s162
      %165 = dma.vmem_to_hbm [thread:$0]  %s161, 16, %s163, [#allocation3]
    $region9: #{tpu_custom_call.1} parent=1 // pred_fallthru
      _
    // Predicated region
    $region10: #{tpu_custom_call.1} parent=1 // pred_check
      _
    $region11: #{tpu_custom_call.1} parent=1 // pred_check_branch
      %167 = sbr.rel (0) target = $region13
    $region12: #{tpu_custom_call.1} parent=1 // pred_region
      %169 = vsyncadd [#allocation5], 0
      %s171 = sshll.u32 [#allocation4], 4
      %s172 = int_to_ptr.vmem [resolvable:$true] %s171
      %s173 = sshll.u32 %s2, 4
      %s174 = int_to_ptr.hbm [resolvable:$true] %s173
      %176 = dma.vmem_to_hbm [thread:$0]  %s172, 16, %s174, [#allocation5]
    $region13: #{tpu_custom_call.1} parent=1 // pred_fallthru
      _
    // Predicated region
    $region14: #{tpu_custom_call.1} parent=1 // pred_check
      _
    $region15: #{tpu_custom_call.1} parent=1 // pred_check_branch
      %178 = sbr.rel (0) target = $region17
    $region16: #{tpu_custom_call.1} parent=1 // pred_region
      %180 = vsyncadd [#allocation5], 0
      %s182 = sshll.u32 [#allocation6], 4
      %s183 = int_to_ptr.vmem [resolvable:$true] %s182
      %s184 = sshll.u32 %s3, 4
      %s185 = int_to_ptr.hbm [resolvable:$true] %s184
      %187 = dma.vmem_to_hbm [thread:$0]  %s183, 16, %s185, [#allocation5]
    $region17: #{tpu_custom_call.1} parent=1 // pred_fallthru
      _
    // Predicated region
    $region18: #{tpu_custom_call.1} parent=1 // pred_check
      _
    $region19: #{tpu_custom_call.1} parent=1 // pred_check_branch
      %189 = sbr.rel (0) target = $region21
    $region20: #{tpu_custom_call.1} parent=1 // pred_region
      %191 = vsyncadd [#allocation8], 0
      %s193 = sshll.u32 [#allocation7], 4
      %s194 = int_to_ptr.vmem [resolvable:$true] %s193
      %s195 = sshll.u32 %s4, 4
      %s196 = int_to_ptr.hbm [resolvable:$true] %s195
      %198 = dma.vmem_to_hbm [thread:$0]  %s194, 16, %s196, [#allocation8]
    $region21: #{tpu_custom_call.1} parent=1 // pred_fallthru
      _
    // Predicated region
    $region22: #{tpu_custom_call.1} parent=1 // pred_check
      _
    $region23: #{tpu_custom_call.1} parent=1 // pred_check_branch
      %200 = sbr.rel (0) target = $region25
    $region24: #{tpu_custom_call.1} parent=1 // pred_region
      %202 = dma.done [#allocation3], 16
    $region25: #{tpu_custom_call.1} parent=1 // pred_fallthru
      _
    // Predicated region
    $region26: #{tpu_custom_call.1} parent=1 // pred_check
      _
    $region27: #{tpu_custom_call.1} parent=1 // pred_check_branch
      %204 = sbr.rel (0) target = $region29
    $region28: #{tpu_custom_call.1} parent=1 // pred_region
      %206 = dma.done [#allocation5], 16
    $region29: #{tpu_custom_call.1} parent=1 // pred_fallthru
      _
    // Predicated region
    $region30: #{tpu_custom_call.1} parent=1 // pred_check
      _
    $region31: #{tpu_custom_call.1} parent=1 // pred_check_branch
      %208 = sbr.rel (0) target = $region33
    $region32: #{tpu_custom_call.1} parent=1 // pred_region
      %210 = dma.done [#allocation5], 16
    $region33: #{tpu_custom_call.1} parent=1 // pred_fallthru
      _
    // Predicated region
    $region34: #{tpu_custom_call.1} parent=1 // pred_check
      _
    $region35: #{tpu_custom_call.1} parent=1 // pred_check_branch
      %212 = sbr.rel (0) target = $region37
    $region36: #{tpu_custom_call.1} parent=1 // pred_region
      %214 = dma.done [#allocation8], 16
    $region37: #{tpu_custom_call.1} parent=1 // pred_fallthru
      _
    %215 = vsyncpa [#allocation3], 1
    %216 = vsyncpa [#allocation5], 1
    %217 = vsyncpa [#allocation8], 1

</llo_original>
